<compile_context>
chip_gen: v5e
topology: v5e:2x2
jax: 0.10.0
libtpu: 0.0.40
codegen_flags: <defaults>
</compile_context>

<pallas_src>
import functools

import jax
import jax.numpy as jnp
from jax import lax
from jax.experimental import pallas as pl
from jax.experimental.pallas import tpu as pltpu


# ----------------------------------------------------------------------------
# Kernel
# ----------------------------------------------------------------------------
def _postnorm_kernel(gamma_ref, beta_ref, x_ref, o_ref, *, eps, inv_d, fused_fn):
    # gamma_ref / beta_ref: resident (1, D) f32 blocks (cast hoisted to wrapper).
    # x_ref / o_ref: (TILE_N, D) tiles; LayerNorm reduction over the lane axis.
    x = x_ref[...].astype(jnp.float32)
    if fused_fn is not None:
        x = fused_fn(x)                               # elementwise fn fused in-kernel

    # Single statistics pass: row sum + row sum-of-squares (f32 accumulation).
    s = jnp.sum(x, axis=-1, keepdims=True)
    ss = jnp.sum(x * x, axis=-1, keepdims=True)
    mean = s * inv_d
    var = jnp.maximum(ss * inv_d - mean * mean, 0.0)  # population variance, clamp cancellation
    inv = lax.rsqrt(var + eps)

    y = (x - mean) * inv * gamma_ref[...] + beta_ref[...]
    o_ref[...] = y.astype(o_ref.dtype)


# ----------------------------------------------------------------------------
# Helpers
# ----------------------------------------------------------------------------
def _vmem_capacity_bytes() -> int:
    try:
        cap = getattr(pltpu.get_tpu_info(), "vmem_capacity_bytes", None)
        if cap:
            return int(cap)
    except Exception:
        pass
    return 64 * 1024 * 1024  # conservative fallback (v7x per-TC VMEM)


def _native_sublane(itemsize: int) -> int:
    # 8 rows for 4-byte, 16 for 2-byte, 32 for 1-byte dtypes (sublane packing).
    return max(8, 32 // max(1, itemsize))


# ----------------------------------------------------------------------------
# Wrapper: row-wise LayerNorm (optionally with a fused elementwise fn)
# ----------------------------------------------------------------------------
def layer_norm(x: jax.Array, gamma: jax.Array, beta: jax.Array,
               *, eps: float = 1e-5, tile_n: int | None = None,
               fused_fn=None, donate_input: bool = False) -> jax.Array:
    orig_shape = x.shape
    d = orig_shape[-1]
    assert gamma.size == d and beta.size == d

    x2 = x.reshape(-1, d)
    n = x2.shape[0]
    # Hoisted per-step casts: resident blocks arrive in f32.
    gamma2 = gamma.reshape(1, d).astype(jnp.float32)
    beta2 = beta.reshape(1, d).astype(jnp.float32)

    itemsize = jnp.dtype(x2.dtype).itemsize
    sublane = _native_sublane(itemsize)

    # VMEM budget: 3/4 of physical capacity (48 MiB on v7x, 96 MiB on v5e/v6e),
    # minus headroom for double-buffered in + out tiles and ~2 f32 temporaries.
    vmem_cap = _vmem_capacity_bytes()
    vmem_limit = min((vmem_cap * 3) // 4, 96 * 1024 * 1024)
    budget = max(8 * 1024 * 1024, vmem_limit - 8 * 1024 * 1024)

    if tile_n is None:
        target_bytes = 4 * 1024 * 1024           # amortize ~0.35 us/step grid overhead
        tile_n = max(sublane, target_bytes // max(1, d * itemsize))
    # Clamp against the VMEM budget: 2x in + 2x out (double-buffered) + 2x f32 temps.
    per_row_bytes = d * (4 * itemsize + 2 * 4)
    tile_n = min(tile_n, max(sublane, budget // per_row_bytes))
    tile_n = min(tile_n, n)
    if n >= sublane:
        tile_n = max(sublane, (tile_n // sublane) * sublane)
    # else: tile_n == n (full-extent block is always legal)

    grid = (pl.cdiv(n, tile_n),)                 # ragged trailing block handled by Pallas

    cost = pl.CostEstimate(
        flops=10 * n * d,
        transcendentals=n + (n * d if fused_fn is not None else 0),
        bytes_accessed=(2 * n * d + 2 * d) * itemsize,
    )

    kernel = functools.partial(_postnorm_kernel, eps=eps, inv_d=1.0 / d,
                               fused_fn=fused_fn)

    out = pl.pallas_call(
        kernel,
        out_shape=jax.ShapeDtypeStruct((n, d), x2.dtype),
        grid_spec=pltpu.PrefetchScalarGridSpec(
            num_scalar_prefetch=0,
            grid=grid,
            in_specs=[
                # gamma / beta: constant block index -> resident, no per-step DMA
                pl.BlockSpec((1, d), lambda i: (0, 0)),
                pl.BlockSpec((1, d), lambda i: (0, 0)),
                # x: tile over rows, full feature dim on lanes
                pl.BlockSpec((tile_n, d), lambda i: (i, 0)),
            ],
            out_specs=pl.BlockSpec((tile_n, d), lambda i: (i, 0)),
        ),
        compiler_params=pltpu.CompilerParams(
            dimension_semantics=("parallel",),   # megacore-shardable row axis
            vmem_limit_bytes=vmem_limit,
        ),
        cost_estimate=cost,
        # Donate the (dead) intermediate buffer when fn was applied in the wrapper.
        input_output_aliases={2: 0} if donate_input else {},
    )(gamma2, beta2, x2)

    return out.reshape(orig_shape)


def make_postnorm_params(dim: int, dtype=jnp.float32):
    """Deterministic init matching nn.LayerNorm(dim): weight=1, bias=0."""
    return jnp.ones((dim,), dtype), jnp.zeros((dim,), dtype)


def post_norm_forward(x: jax.Array, gamma: jax.Array, beta: jax.Array,
                      fn=None, *, eps: float = 1e-5, tile_n: int | None = None,
                      fn_is_elementwise: bool = True, **kwargs) -> jax.Array:
    """PostNorm forward: LayerNorm(fn(x, **kwargs))."""
    if fn is not None and fn_is_elementwise and not kwargs:
        # Elementwise fn (e.g. GELU) is fused into the Pallas kernel: no extra
        # HBM round-trip for the intermediate activation.
        return layer_norm(x, gamma, beta, eps=eps, tile_n=tile_n,
                          fused_fn=fn, donate_input=False)
    # TODO(synk): a non-elementwise wrapped `fn` submodule cannot be lowered into
    # the Pallas kernel; apply it as a plain JAX callable and donate its (dead)
    # output buffer to the norm kernel.
    z = x if fn is None else fn(x, **kwargs)
    return layer_norm(z, gamma, beta, eps=eps, tile_n=tile_n,
                      fused_fn=None, donate_input=fn is not None)


# ----------------------------------------------------------------------------
# Self-test
# ----------------------------------------------------------------------------
if __name__ == "__main__":
    key = jax.random.PRNGKey(0)
    kx, kg, kb = jax.random.split(key, 3)

    batch, seq, dim = 2, 8, 128
    x = jax.random.normal(kx, (batch, seq, dim), dtype=jnp.float32)

    # nn.LayerNorm init is weight=1 / bias=0; perturb slightly so the affine
    # path is exercised by the correctness check.
    gamma, beta = make_postnorm_params(dim)
    gamma = gamma + 0.1 * jax.random.normal(kg, (dim,), jnp.float32)
    beta = beta + 0.1 * jax.random.normal(kb, (dim,), jnp.float32)

    fn = jax.nn.gelu  # stand-in for the wrapped `fn` submodule (elementwise)

    # Fused path (fn applied inside the kernel).
    y_fused = jax.block_until_ready(post_norm_forward(x, gamma, beta, fn=fn))
    # Non-fused fallback path (fn applied in the wrapper, buffer donated).
    y_unfused = jax.block_until_ready(
        post_norm_forward(x, gamma, beta, fn=fn, fn_is_elementwise=False))

    # Reference: plain-JAX PostNorm (LayerNorm, population variance, eps=1e-5).
    z = fn(x)
    mu = jnp.mean(z, axis=-1, keepdims=True)
    var = jnp.mean((z - mu) ** 2, axis=-1, keepdims=True)
    y_ref = (z - mu) * lax.rsqrt(var + 1e-5) * gamma + beta

    assert y_fused.shape == x.shape
    assert jnp.allclose(y_fused, y_ref, atol=1e-4, rtol=1e-4), "fused path mismatch"
    assert jnp.allclose(y_unfused, y_ref, atol=1e-4, rtol=1e-4), "fallback path mismatch"
    print("KERNEL_OK")
</pallas_src>

<mosaic_0001>
module attributes {stable_mosaic.version = 11 : i64} {
  func.func @_postnorm_kernel(%arg0: i32, %arg1: memref<1x128xf32, #tpu.memory_space<vmem>>, %arg2: memref<1x128xf32, #tpu.memory_space<vmem>>, %arg3: memref<16x128xf32, #tpu.memory_space<vmem>>, %arg4: memref<16x128xf32, #tpu.memory_space<vmem>>) attributes {dimension_semantics = [#tpu.dimension_semantics<parallel>], iteration_bounds = array<i64: 1>, scalar_prefetch = 0 : i64, scratch_operands = 0 : i64, tpu.core_type = #tpu.core_type<tc>, window_params = [{pipeline_mode = #tpu.pipeline_mode<synchronous>, transform_indices = @transform_0, window_bounds = array<i64: 1, 128>}, {pipeline_mode = #tpu.pipeline_mode<synchronous>, transform_indices = @transform_1, window_bounds = array<i64: 1, 128>}, {transform_indices = @transform_2, window_bounds = array<i64: 16, 128>}, {transform_indices = @transform_3, window_bounds = array<i64: 16, 128>}]} {
    %c0 = arith.constant 0 : index
    %c0_0 = arith.constant 0 : index
    %0 = vector.load %arg3[%c0, %c0_0] : memref<16x128xf32, #tpu.memory_space<vmem>>, vector<16x128xf32>
    %1 = arith.mulf %0, %0 : vector<16x128xf32>
    %2 = arith.mulf %0, %1 : vector<16x128xf32>
    %cst = arith.constant 4.471500e-02 : f32
    %3 = vector.broadcast %cst : f32 to vector<16x128xf32>
    %4 = arith.mulf %3, %2 : vector<16x128xf32>
    %5 = arith.addf %0, %4 : vector<16x128xf32>
    %cst_1 = arith.constant 0.797884583 : f32
    %6 = vector.broadcast %cst_1 : f32 to vector<16x128xf32>
    %7 = arith.mulf %6, %5 : vector<16x128xf32>
    %8 = math.tanh %7 : vector<16x128xf32>
    %cst_2 = arith.constant 1.000000e+00 : f32
    %9 = vector.broadcast %cst_2 : f32 to vector<16x128xf32>
    %10 = arith.addf %9, %8 : vector<16x128xf32>
    %cst_3 = arith.constant 5.000000e-01 : f32
    %11 = vector.broadcast %cst_3 : f32 to vector<16x128xf32>
    %12 = arith.mulf %11, %10 : vector<16x128xf32>
    %13 = arith.mulf %0, %12 : vector<16x128xf32>
    %cst_4 = arith.constant dense<0.000000e+00> : vector<16xf32>
    %14 = vector.multi_reduction <add>, %13, %cst_4 [1] : vector<16x128xf32> to vector<16xf32>
    %15 = vector.shape_cast %14 : vector<16xf32> to vector<16x1xf32>
    %16 = arith.mulf %13, %13 : vector<16x128xf32>
    %cst_5 = arith.constant dense<0.000000e+00> : vector<16xf32>
    %17 = vector.multi_reduction <add>, %16, %cst_5 [1] : vector<16x128xf32> to vector<16xf32>
    %18 = vector.shape_cast %17 : vector<16xf32> to vector<16x1xf32>
    %cst_6 = arith.constant 7.812500e-03 : f32
    %19 = vector.broadcast %cst_6 : f32 to vector<16x1xf32>
    %20 = arith.mulf %15, %19 : vector<16x1xf32>
    %cst_7 = arith.constant 7.812500e-03 : f32
    %21 = vector.broadcast %cst_7 : f32 to vector<16x1xf32>
    %22 = arith.mulf %18, %21 : vector<16x1xf32>
    %23 = arith.mulf %20, %20 : vector<16x1xf32>
    %24 = arith.subf %22, %23 : vector<16x1xf32>
    %cst_8 = arith.constant 0.000000e+00 : f32
    %25 = vector.broadcast %cst_8 : f32 to vector<16x1xf32>
    %26 = arith.maximumf %24, %25 : vector<16x1xf32>
    %cst_9 = arith.constant 9.99999974E-6 : f32
    %27 = vector.broadcast %cst_9 : f32 to vector<16x1xf32>
    %28 = arith.addf %26, %27 : vector<16x1xf32>
    %29 = math.rsqrt %28 : vector<16x1xf32>
    %30 = vector.broadcast %20 : vector<16x1xf32> to vector<16x128xf32>
    %31 = arith.subf %13, %30 : vector<16x128xf32>
    %32 = vector.broadcast %29 : vector<16x1xf32> to vector<16x128xf32>
    %33 = arith.mulf %31, %32 : vector<16x128xf32>
    %c0_10 = arith.constant 0 : index
    %c0_11 = arith.constant 0 : index
    %34 = vector.load %arg1[%c0_10, %c0_11] : memref<1x128xf32, #tpu.memory_space<vmem>>, vector<1x128xf32>
    %35 = vector.broadcast %34 : vector<1x128xf32> to vector<16x128xf32>
    %36 = arith.mulf %33, %35 : vector<16x128xf32>
    %c0_12 = arith.constant 0 : index
    %c0_13 = arith.constant 0 : index
    %37 = vector.load %arg2[%c0_12, %c0_13] : memref<1x128xf32, #tpu.memory_space<vmem>>, vector<1x128xf32>
    %38 = vector.broadcast %37 : vector<1x128xf32> to vector<16x128xf32>
    %39 = arith.addf %36, %38 : vector<16x128xf32>
    %c0_14 = arith.constant 0 : index
    %c0_15 = arith.constant 0 : index
    %40 = vector.load %arg4[%c0_14, %c0_15] : memref<16x128xf32, #tpu.memory_space<vmem>>, vector<16x128xf32>
    tpu.vector_store %arg4[%c0_14, %c0_15], %39 {strides = array<i32>} : memref<16x128xf32, #tpu.memory_space<vmem>>, vector<16x128xf32>,
    return
  }
  func.func @transform_0(%arg0: i32) -> (i32, i32) {
    %c0_i32 = arith.constant 0 : i32
    %c0_i32_0 = arith.constant 0 : i32
    %c0_i32_1 = arith.constant 0 : i32
    return %c0_i32, %c0_i32_0 : i32, i32
  }
  func.func @transform_1(%arg0: i32) -> (i32, i32) {
    %c0_i32 = arith.constant 0 : i32
    %c0_i32_0 = arith.constant 0 : i32
    %c0_i32_1 = arith.constant 0 : i32
    return %c0_i32, %c0_i32_0 : i32, i32
  }
  func.func @transform_2(%arg0: i32) -> (i32, i32) {
    %c0_i32 = arith.constant 0 : i32
    %c0_i32_0 = arith.constant 0 : i32
    return %arg0, %c0_i32 : i32, i32
  }
  func.func @transform_3(%arg0: i32) -> (i32, i32) {
    %c0_i32 = arith.constant 0 : i32
    %c0_i32_0 = arith.constant 0 : i32
    return %arg0, %c0_i32 : i32, i32
  }
}

</mosaic_0001>

<llo_original>
// kernel: tpu_custom_call.1
$region0: #{tpu_custom_call.1}
  #allocation0 [shape = 'u32[]', space=smem, size = 0x4, offset = 0x4, fixed_abs, tag = 'smem constant byte address 0x4 - core index']
  #allocation1 [shape = 'u32[72,128]{1,0:T(1,128)}', space=vmem, size = 0x9000, scoped, tag = 'internal scratch']
  %s0 = inlined_call_operand.hbm [shape: f32[1,128], index: 0, kind: input, shape index: {}]
  %s1 = inlined_call_operand.hbm [shape: f32[1,128], index: 1, kind: input, shape index: {}]
  %s2 = inlined_call_operand.hbm [shape: f32[16,128], index: 2, kind: input, shape index: {}]
  %s3 = inlined_call_operand.hbm [shape: f32[16,128], index: 3, kind: output, shape index: {}]
  %s4 = sld [smem:[#allocation0]]
  $region34: #{tpu_custom_call.1} parent=0
    _
  %s6 = ssub.s32 1, %s4
  %s7 = scalar_select 0, %s6, %s4
  $region1: #{tpu_custom_call.1} parent=0
    #allocation2 [shape = 'u8[512]{0}', space=vmem, size = 0x400, scoped, tag = 'input window, operand 0, single buffered']
    #allocation3 [shape = 's32[1]{0}', space=sflag, size = 0x4, scoped, tag = 'scoped memory for tpu_custom_call.1']
    #allocation4 [shape = 's32[1]{0}', space=sflag, size = 0x4, scoped, tag = 'scoped memory for tpu_custom_call.1']
    #allocation5 [shape = 'u8[512]{0}', space=vmem, size = 0x400, scoped, tag = 'input window, operand 1, single buffered']
    #allocation6 [shape = 's32[1]{0}', space=sflag, size = 0x4, scoped, tag = 'scoped memory for tpu_custom_call.1']
    #allocation7 [shape = 'u8[8192]{0}', space=vmem, size = 0x2000, scoped, tag = 'input window, operand 2, single buffered']
    #allocation8 [shape = 'u8[8192]{0}', space=vmem, size = 0x2000, scoped, tag = 'output window, operand 0, single buffered']
    %8 = vsyncpa [#allocation3], 0
    %9 = vsyncpa [#allocation6], 0
    %10 = vsyncpa [#allocation4], 0
    // Predicated region
    $region2: #{tpu_custom_call.1} parent=1 // pred_check
      _
    $region3: #{tpu_custom_call.1} parent=1 // pred_check_branch
      %12 = sbr.rel (0) target = $region5
    $region4: #{tpu_custom_call.1} parent=1 // pred_region
      %14 = vsyncadd [#allocation3], 0
      %s16 = sshll.u32 %s0, 4
      %s17 = int_to_ptr.hbm [resolvable:$true] %s16
      %s18 = sshll.u32 [#allocation2], 4
      %s19 = int_to_ptr.vmem [resolvable:$true] %s18
      %21 = dma.hbm_to_vmem [thread:$0]  %s17, 16, %s19, [#allocation3]
    $region5: #{tpu_custom_call.1} parent=1 // pred_fallthru
      _
    // Predicated region
    $region6: #{tpu_custom_call.1} parent=1 // pred_check
      _
    $region7: #{tpu_custom_call.1} parent=1 // pred_check_branch
      %23 = sbr.rel (0) target = $region9
    $region8: #{tpu_custom_call.1} parent=1 // pred_region
      %25 = vsyncadd [#allocation6], 0
      %s27 = sshll.u32 %s1, 4
      %s28 = int_to_ptr.hbm [resolvable:$true] %s27
      %s29 = sshll.u32 [#allocation5], 4
      %s30 = int_to_ptr.vmem [resolvable:$true] %s29
      %32 = dma.hbm_to_vmem [thread:$0]  %s28, 16, %s30, [#allocation6]
    $region9: #{tpu_custom_call.1} parent=1 // pred_fallthru
      _
    // Predicated region
    $region10: #{tpu_custom_call.1} parent=1 // pred_check
      _
    $region11: #{tpu_custom_call.1} parent=1 // pred_check_branch
      %34 = sbr.rel (0) target = $region13
    $region12: #{tpu_custom_call.1} parent=1 // pred_region
      %36 = vsyncadd [#allocation6], 0
      %s37 = sshll.u32 %s2, 4
      %s38 = int_to_ptr.hbm [resolvable:$true] %s37
      %s39 = sshll.u32 [#allocation7], 4
      %s40 = int_to_ptr.vmem [resolvable:$true] %s39
      %45 = dma.hbm_to_vmem [thread:$0]  %s38, 256, %s40, [#allocation6], 128, 128, 8
    $region13: #{tpu_custom_call.1} parent=1 // pred_fallthru
      _
    // Predicated region
    $region14: #{tpu_custom_call.1} parent=1 // pred_check
      _
    $region15: #{tpu_custom_call.1} parent=1 // pred_check_branch
      %47 = sbr.rel (0) target = $region17
    $region16: #{tpu_custom_call.1} parent=1 // pred_region
      %49 = dma.done [#allocation3], 16
    $region17: #{tpu_custom_call.1} parent=1 // pred_fallthru
      _
    // Predicated region
    $region18: #{tpu_custom_call.1} parent=1 // pred_check
      _
    $region19: #{tpu_custom_call.1} parent=1 // pred_check_branch
      %51 = sbr.rel (0) target = $region21
    $region20: #{tpu_custom_call.1} parent=1 // pred_region
      %53 = dma.done [#allocation6], 16
    $region21: #{tpu_custom_call.1} parent=1 // pred_fallthru
      _
    // Predicated region
    $region22: #{tpu_custom_call.1} parent=1 // pred_check
      _
    $region23: #{tpu_custom_call.1} parent=1 // pred_check_branch
      %55 = sbr.rel (0) target = $region25
    $region24: #{tpu_custom_call.1} parent=1 // pred_region
      %57 = dma.done [#allocation6], 256
    $region25: #{tpu_custom_call.1} parent=1 // pred_fallthru
      _
    %v58 = vld [vmem:[#allocation7] sm:$0xff]
    %v59 = vld [vmem:[#allocation7 + $0x8] sm:$0xff]
    %v60 = vmul.f32 %v58, %v58
    %v61 = vmul.f32 %v59, %v59
    %v62 = vmul.f32 %v58, %v60
    %v63 = vmul.f32 %v59, %v61
    %v64 = vmul.f32 %v62, 0.044715
    %v65 = vmul.f32 %v63, 0.044715
    %v66 = vadd.f32 %v58, %v64
    %v67 = vadd.f32 %v59, %v65
    %v68 = vmul.f32 %v66, 0.7978846
    %v69 = vmul.f32 %v67, 0.7978846
    %v70 = vtanh.pop %v68
    %v71 = vtanh.pop %v69
    %v72 = vadd.f32 %v70, 1.0
    %v73 = vadd.f32 %v71, 1.0
    %v74 = vmul.f32 %v72, 0.5
    %v75 = vmul.f32 %v73, 0.5
    %v76 = vmul.f32 %v58, %v74
    %v77 = vmul.f32 %v59, %v75
    %78 = vadd.xlane.f32.xlu0 %v76
    %v79 = vpop.xlane.xlu0 %78
    %80 = vadd.xlane.f32.xlu0 %v77
    %v81 = vpop.xlane.xlu0 %80
    %v82 = vmul.f32 %v76, %v76
    %v83 = vmul.f32 %v77, %v77
    %84 = vadd.xlane.f32.xlu0 %v82
    %v85 = vpop.xlane.xlu0 %84
    %86 = vadd.xlane.f32.xlu0 %v83
    %v87 = vpop.xlane.xlu0 %86
    %v88 = vmul.f32 %v79, 0.0078125
    %v89 = vmul.f32 %v81, 0.0078125
    %v90 = vmul.f32 %v85, 0.0078125
    %v91 = vmul.f32 %v87, 0.0078125
    %v92 = vmul.f32 %v88, %v88
    %v93 = vmul.f32 %v89, %v89
    %v94 = vsub.f32 %v90, %v92
    %v95 = vsub.f32 %v91, %v93
    %v96 = vmax.f32 %v94, 0.0
    %v97 = vmax.f32 %v95, 0.0
    %v98 = vadd.f32 %v96, 1e-05
    %v99 = vadd.f32 %v97, 1e-05
    %v100 = vrsqrt.pop %v98
    %v101 = vmul.f32 %v100, %v98
    %v102 = vmul.f32 %v101, %v100
    %v103 = vmul.f32 0.5, %v102
    %v104 = vsub.f32 1.5, %v103
    %v105 = vmul.f32 %v100, %v104
    %vm106 = vweird.f32 %v98
    %vm107 = vweird.f32 %v100
    %vm108 = vmor %vm106, %vm107
    %v109 = vsel %vm108, %v100, %v105
    %v110 = vrsqrt.pop %v99
    %v111 = vmul.f32 %v110, %v99
    %v112 = vmul.f32 %v111, %v110
    %v113 = vmul.f32 0.5, %v112
    %v114 = vsub.f32 1.5, %v113
    %v115 = vmul.f32 %v110, %v114
    %vm116 = vweird.f32 %v99
    %vm117 = vweird.f32 %v110
    %vm118 = vmor %vm116, %vm117
    %v119 = vsel %vm118, %v110, %v115
    %v120 = vsub.f32 %v76, %v88
    %v121 = vsub.f32 %v77, %v89
    %v122 = vmul.f32 %v120, %v109
    %v123 = vmul.f32 %v121, %v119
    %v124 = vld [vmem:[#allocation2] sm:$0x1]
    %v126 = vperm.slane %v124, 0
    %v128 = vmul.f32 %v122, %v126
    %v129 = vmul.f32 %v123, %v126
    %v130 = vld [vmem:[#allocation5] sm:$0x1]
    %v132 = vperm.slane %v130, 0
    %v134 = vadd.f32 %v128, %v132
    %v135 = vadd.f32 %v129, %v132
    %136 = vst [vmem:[#allocation8] sm:$0xff] %v134
    %137 = vst [vmem:[#allocation8 + $0x8] sm:$0xff] %v135
    // Predicated region
    $region26: #{tpu_custom_call.1} parent=1 // pred_check
      _
    $region27: #{tpu_custom_call.1} parent=1 // pred_check_branch
      %139 = sbr.rel (0) target = $region29
    $region28: #{tpu_custom_call.1} parent=1 // pred_region
      %141 = vsyncadd [#allocation4], 0
      %s142 = sshll.u32 [#allocation8], 4
      %s143 = int_to_ptr.vmem [resolvable:$true] %s142
      %s144 = sshll.u32 %s3, 4
      %s145 = int_to_ptr.hbm [resolvable:$true] %s144
      %150 = dma.vmem_to_hbm [thread:$0]  %s143, 256, %s145, [#allocation4], 128, 128, 8
    $region29: #{tpu_custom_call.1} parent=1 // pred_fallthru
      _
    // Predicated region
    $region30: #{tpu_custom_call.1} parent=1 // pred_check
      _
    $region31: #{tpu_custom_call.1} parent=1 // pred_check_branch
      %152 = sbr.rel (0) target = $region33
    $region32: #{tpu_custom_call.1} parent=1 // pred_region
      %154 = dma.done [#allocation4], 256
    $region33: #{tpu_custom_call.1} parent=1 // pred_fallthru
      _
    %155 = vsyncpa [#allocation3], 1
    %156 = vsyncpa [#allocation6], 1
    %157 = vsyncpa [#allocation4], 1

</llo_original>
